<compile_context>
chip_gen: v7x
topology: tpu7x:2x2x1
jax: 0.10.0
libtpu: 0.0.40
codegen_flags: <defaults>
</compile_context>

<pallas_src>
import jax
import jax.numpy as jnp
import numpy as np
from jax.experimental import pallas as pl
from jax.experimental.pallas import tpu as pltpu


def pooling_mlp_kernel(x_ref, m_ref, wf_ref, wm_ref, wa_ref, b_ref, out_ref):
    # x_ref:  (TB, S, Hp)  token embeddings (f32)
    # m_ref:  (TB, S)      1.0 keep / 0.0 masked
    # wf/wm/wa: (Hp, Hp)   MLP weight slabs for [first | max | mean] (input-major)
    # b_ref:  (1, Hp)      MLP bias
    # out_ref:(TB, Hp)
    x = x_ref[...]                                   # (TB, S, Hp) f32
    m = m_ref[...]                                   # (TB, S)     f32
    m3 = m[:, :, None]                               # (TB, S, 1)

    # first-token pooling
    first = x[:, 0, :]                               # (TB, Hp)

    # masked max pooling: additive -1e4 penalty (torch semantics), penalty kept
    # at (TB, S, 1) and broadcast only inside the add.
    max_pool = jnp.max(x + (1.0 - m3) * -10000.0, axis=1)   # (TB, Hp)

    # masked mean pooling: EUP reciprocal instead of a VPU divide.
    cnt = jnp.sum(m, axis=1, keepdims=True)                  # (TB, 1)
    inv_cnt = pl.reciprocal(cnt, approx=True)
    mean_pool = jnp.sum(x * m3, axis=1) * inv_cnt            # (TB, Hp)

    # perceptron: Linear(3H -> H) + Tanh, concat replaced by 3 accumulating dots.
    y = jnp.dot(first, wf_ref[...], preferred_element_type=jnp.float32)
    y = y + jnp.dot(max_pool, wm_ref[...], preferred_element_type=jnp.float32)
    y = y + jnp.dot(mean_pool, wa_ref[...], preferred_element_type=jnp.float32)
    out_ref[...] = jnp.tanh(y + b_ref[...]).astype(out_ref.dtype)


def _round_up(x, m):
    return (x + m - 1) // m * m


def pooling_layer(token_embeddings, mask, w, b):
    """token_embeddings: (B,S,H) f32, mask: (B,S), w: (3H,H) input-major, b: (1,H)."""
    B, S, H = token_embeddings.shape
    assert w.shape == (3 * H, H)
    assert b.shape == (1, H)

    # Lane-dense hidden dimension.
    Hp = _round_up(H, 128)

    # Batch tile: multiple of 8, at most 128, shrunk to a conservative VMEM
    # budget (double-buffered x/mask/out + resident weight slabs) for v7x.
    def vmem_est(tb):
        return (2 * tb * S * Hp * 4          # x tiles (double-buffered)
                + 2 * tb * S * 4             # mask tiles
                + 2 * tb * Hp * 4            # out tiles
                + 3 * Hp * Hp * 4 + Hp * 4)  # weights + bias (resident)

    TB = min(128, _round_up(B, 8))
    while TB > 8 and vmem_est(TB) > 36 * 1024 * 1024:
        TB = _round_up(TB // 2, 8)
    Bp = _round_up(B, TB)

    x = token_embeddings.astype(jnp.float32)
    m = mask.astype(jnp.float32)
    # Pad batch (mask=1 on padded rows so the mean denominator never hits 0/0)
    # and hidden (zero columns meet zero weight rows -> no contribution).
    x = jnp.pad(x, ((0, Bp - B), (0, 0), (0, Hp - H)))
    m = jnp.pad(m, ((0, Bp - B), (0, 0)), constant_values=1.0)

    w = w.astype(jnp.float32)
    pad_w = lambda wi: jnp.pad(wi, ((0, Hp - H), (0, Hp - H)))
    wf = pad_w(w[0 * H:1 * H])
    wm = pad_w(w[1 * H:2 * H])
    wa = pad_w(w[2 * H:3 * H])
    bp = jnp.pad(b.astype(jnp.float32), ((0, 0), (0, Hp - H)))

    out = pl.pallas_call(
        pooling_mlp_kernel,
        out_shape=jax.ShapeDtypeStruct((Bp, Hp), jnp.float32),
        grid=(Bp // TB,),
        in_specs=[
            pl.BlockSpec((TB, S, Hp), lambda i: (i, 0, 0)),   # x: tiled over batch
            pl.BlockSpec((TB, S), lambda i: (i, 0)),          # mask
            pl.BlockSpec((Hp, Hp), lambda i: (0, 0)),         # w_first (resident)
            pl.BlockSpec((Hp, Hp), lambda i: (0, 0)),         # w_max
            pl.BlockSpec((Hp, Hp), lambda i: (0, 0)),         # w_mean
            pl.BlockSpec((1, Hp), lambda i: (0, 0)),          # bias
        ],
        out_specs=pl.BlockSpec((TB, Hp), lambda i: (i, 0)),
        compiler_params=pltpu.CompilerParams(
            dimension_semantics=("parallel",),
            vmem_limit_bytes=48 * 1024 * 1024,
        ),
    )(x, m, wf, wm, wa, bp)

    # TODO(synk): for very long sequences (S >= 1024) add a second "arbitrary"
    # grid axis streaming S with running max/sum/count accumulators.
    return out[:B, :H]


def reference(token_embeddings, mask, w, b):
    x = token_embeddings.astype(jnp.float32)
    m = mask.astype(jnp.float32)
    m3 = m[:, :, None]
    first = x[:, 0, :]
    max_pool = jnp.max(x + (1.0 - m3) * -10000.0, axis=1)
    mean_pool = jnp.sum(x * m3, axis=1) / jnp.sum(m, axis=1, keepdims=True)
    pooled = jnp.concatenate([first, max_pool, mean_pool], axis=1)
    return jnp.tanh(pooled @ w + b)


if __name__ == "__main__":
    B, S, H = 2, 8, 32

    key = jax.random.PRNGKey(0)
    k_x, k_w, k_b = jax.random.split(key, 3)

    token_embeddings = jax.random.normal(k_x, (B, S, H), dtype=jnp.float32)

    # Deterministic mask: first row keeps 5 tokens, second row keeps all 8.
    lengths = jnp.array([5, 8], dtype=jnp.int32)
    mask = (jnp.arange(S)[None, :] < lengths[:, None]).astype(jnp.float32)  # (B, S)

    # Deterministic perceptron params (Linear(3H -> H)); stored input-major (3H, H).
    w = jax.random.normal(k_w, (3 * H, H), dtype=jnp.float32) * 0.05
    b = jax.random.normal(k_b, (1, H), dtype=jnp.float32) * 0.05

    out = pooling_layer(token_embeddings, mask, w, b)
    out = jax.block_until_ready(out)

    ref = reference(token_embeddings, mask, w, b)
    # Tolerance accounts for the EUP approx reciprocal in the mean pool
    # (~2^-12 relative error); everything else is exact f32.
    np.testing.assert_allclose(np.asarray(out), np.asarray(ref), rtol=2e-3, atol=2e-3)

    print("KERNEL_OK")
</pallas_src>

<mosaic_0001>
module attributes {stable_mosaic.version = 11 : i64} {
  func.func @pooling_mlp_kernel(%arg0: i32, %arg1: memref<8x8x128xf32, #tpu.memory_space<vmem>>, %arg2: memref<8x8xf32, #tpu.memory_space<vmem>>, %arg3: memref<128x128xf32, #tpu.memory_space<vmem>>, %arg4: memref<128x128xf32, #tpu.memory_space<vmem>>, %arg5: memref<128x128xf32, #tpu.memory_space<vmem>>, %arg6: memref<1x128xf32, #tpu.memory_space<vmem>>, %arg7: memref<8x128xf32, #tpu.memory_space<vmem>>) attributes {dimension_semantics = [#tpu.dimension_semantics<parallel>], iteration_bounds = array<i64: 1>, scalar_prefetch = 0 : i64, scratch_operands = 0 : i64, tpu.core_type = #tpu.core_type<tc>, window_params = [{transform_indices = @transform_0, window_bounds = array<i64: 8, 8, 128>}, {transform_indices = @transform_1, window_bounds = array<i64: 8, 8>}, {pipeline_mode = #tpu.pipeline_mode<synchronous>, transform_indices = @transform_2, window_bounds = array<i64: 128, 128>}, {pipeline_mode = #tpu.pipeline_mode<synchronous>, transform_indices = @transform_3, window_bounds = array<i64: 128, 128>}, {pipeline_mode = #tpu.pipeline_mode<synchronous>, transform_indices = @transform_4, window_bounds = array<i64: 128, 128>}, {pipeline_mode = #tpu.pipeline_mode<synchronous>, transform_indices = @transform_5, window_bounds = array<i64: 1, 128>}, {transform_indices = @transform_6, window_bounds = array<i64: 8, 128>}]} {
    %c0 = arith.constant 0 : index
    %c0_0 = arith.constant 0 : index
    %c0_1 = arith.constant 0 : index
    %0 = vector.load %arg1[%c0, %c0_0, %c0_1] : memref<8x8x128xf32, #tpu.memory_space<vmem>>, vector<8x8x128xf32>
    %c0_2 = arith.constant 0 : index
    %c0_3 = arith.constant 0 : index
    %1 = vector.load %arg2[%c0_2, %c0_3] : memref<8x8xf32, #tpu.memory_space<vmem>>, vector<8x8xf32>
    %2 = vector.shape_cast %1 : vector<8x8xf32> to vector<8x8x1xf32>
    %3 = vector.extract_strided_slice %0 {offsets = [0, 0, 0], sizes = [8, 1, 128], strides = [1, 1, 1]} : vector<8x8x128xf32> to vector<8x1x128xf32>
    %4 = vector.shape_cast %3 : vector<8x1x128xf32> to vector<8x128xf32>
    %cst = arith.constant 1.000000e+00 : f32
    %5 = vector.broadcast %cst : f32 to vector<8x8x1xf32>
    %6 = arith.subf %5, %2 : vector<8x8x1xf32>
    %cst_4 = arith.constant -1.000000e+04 : f32
    %7 = vector.broadcast %cst_4 : f32 to vector<8x8x1xf32>
    %8 = arith.mulf %6, %7 : vector<8x8x1xf32>
    %9 = vector.broadcast %8 : vector<8x8x1xf32> to vector<8x8x128xf32>
    %10 = arith.addf %0, %9 : vector<8x8x128xf32>
    %cst_5 = arith.constant dense<0xFF800000> : vector<8x128xf32>
    %11 = vector.multi_reduction <maximumf>, %10, %cst_5 [1] : vector<8x8x128xf32> to vector<8x128xf32>
    %cst_6 = arith.constant dense<0.000000e+00> : vector<8xf32>
    %12 = vector.multi_reduction <add>, %1, %cst_6 [1] : vector<8x8xf32> to vector<8xf32>
    %13 = vector.shape_cast %12 : vector<8xf32> to vector<8x1xf32>
    %14 = tpu.reciprocal %13 {approx = true} : vector<8x1xf32> -> vector<8x1xf32>
    %15 = vector.broadcast %2 : vector<8x8x1xf32> to vector<8x8x128xf32>
    %16 = arith.mulf %0, %15 : vector<8x8x128xf32>
    %cst_7 = arith.constant dense<0.000000e+00> : vector<8x128xf32>
    %17 = vector.multi_reduction <add>, %16, %cst_7 [1] : vector<8x8x128xf32> to vector<8x128xf32>
    %18 = vector.broadcast %14 : vector<8x1xf32> to vector<8x128xf32>
    %19 = arith.mulf %17, %18 : vector<8x128xf32>
    %c0_8 = arith.constant 0 : index
    %c0_9 = arith.constant 0 : index
    %20 = vector.load %arg3[%c0_8, %c0_9] : memref<128x128xf32, #tpu.memory_space<vmem>>, vector<128x128xf32>
    %cst_10 = arith.constant dense<0.000000e+00> : vector<8x128xf32>
    %21 = tpu.matmul %4, %20, %cst_10 {dimension_numbers = #tpu.dot_dimension_numbers<[1], [0], [0], [1], [0, 0, 1, 1], [], []>} : vector<8x128xf32>, vector<128x128xf32>, vector<8x128xf32> -> vector<8x128xf32>
    %c0_11 = arith.constant 0 : index
    %c0_12 = arith.constant 0 : index
    %22 = vector.load %arg4[%c0_11, %c0_12] : memref<128x128xf32, #tpu.memory_space<vmem>>, vector<128x128xf32>
    %cst_13 = arith.constant dense<0.000000e+00> : vector<8x128xf32>
    %23 = tpu.matmul %11, %22, %cst_13 {dimension_numbers = #tpu.dot_dimension_numbers<[1], [0], [0], [1], [0, 0, 1, 1], [], []>} : vector<8x128xf32>, vector<128x128xf32>, vector<8x128xf32> -> vector<8x128xf32>
    %24 = arith.addf %21, %23 : vector<8x128xf32>
    %c0_14 = arith.constant 0 : index
    %c0_15 = arith.constant 0 : index
    %25 = vector.load %arg5[%c0_14, %c0_15] : memref<128x128xf32, #tpu.memory_space<vmem>>, vector<128x128xf32>
    %cst_16 = arith.constant dense<0.000000e+00> : vector<8x128xf32>
    %26 = tpu.matmul %19, %25, %cst_16 {dimension_numbers = #tpu.dot_dimension_numbers<[1], [0], [0], [1], [0, 0, 1, 1], [], []>} : vector<8x128xf32>, vector<128x128xf32>, vector<8x128xf32> -> vector<8x128xf32>
    %27 = arith.addf %24, %26 : vector<8x128xf32>
    %c0_17 = arith.constant 0 : index
    %c0_18 = arith.constant 0 : index
    %28 = vector.load %arg6[%c0_17, %c0_18] : memref<1x128xf32, #tpu.memory_space<vmem>>, vector<1x128xf32>
    %29 = vector.broadcast %28 : vector<1x128xf32> to vector<8x128xf32>
    %30 = arith.addf %27, %29 : vector<8x128xf32>
    %31 = math.tanh %30 : vector<8x128xf32>
    %c0_19 = arith.constant 0 : index
    %c0_20 = arith.constant 0 : index
    %32 = vector.load %arg7[%c0_19, %c0_20] : memref<8x128xf32, #tpu.memory_space<vmem>>, vector<8x128xf32>
    tpu.vector_store %arg7[%c0_19, %c0_20], %31 {strides = array<i32>} : memref<8x128xf32, #tpu.memory_space<vmem>>, vector<8x128xf32>,
    return
  }
  func.func @transform_0(%arg0: i32) -> (i32, i32, i32) {
    %c0_i32 = arith.constant 0 : i32
    %c0_i32_0 = arith.constant 0 : i32
    %c0_i32_1 = arith.constant 0 : i32
    return %arg0, %c0_i32, %c0_i32_0 : i32, i32, i32
  }
  func.func @transform_1(%arg0: i32) -> (i32, i32) {
    %c0_i32 = arith.constant 0 : i32
    %c0_i32_0 = arith.constant 0 : i32
    return %arg0, %c0_i32 : i32, i32
  }
  func.func @transform_2(%arg0: i32) -> (i32, i32) {
    %c0_i32 = arith.constant 0 : i32
    %c0_i32_0 = arith.constant 0 : i32
    %c0_i32_1 = arith.constant 0 : i32
    return %c0_i32, %c0_i32_0 : i32, i32
  }
  func.func @transform_3(%arg0: i32) -> (i32, i32) {
    %c0_i32 = arith.constant 0 : i32
    %c0_i32_0 = arith.constant 0 : i32
    %c0_i32_1 = arith.constant 0 : i32
    return %c0_i32, %c0_i32_0 : i32, i32
  }
  func.func @transform_4(%arg0: i32) -> (i32, i32) {
    %c0_i32 = arith.constant 0 : i32
    %c0_i32_0 = arith.constant 0 : i32
    %c0_i32_1 = arith.constant 0 : i32
    return %c0_i32, %c0_i32_0 : i32, i32
  }
  func.func @transform_5(%arg0: i32) -> (i32, i32) {
    %c0_i32 = arith.constant 0 : i32
    %c0_i32_0 = arith.constant 0 : i32
    %c0_i32_1 = arith.constant 0 : i32
    return %c0_i32, %c0_i32_0 : i32, i32
  }
  func.func @transform_6(%arg0: i32) -> (i32, i32) {
    %c0_i32 = arith.constant 0 : i32
    %c0_i32_0 = arith.constant 0 : i32
    return %arg0, %c0_i32 : i32, i32
  }
}

</mosaic_0001>

<llo_original>
// kernel: tpu_custom_call.1
$region0: #{tpu_custom_call.1}
  #allocation0 [shape = 'u32[]', space=smem, size = 0x4, offset = 0x4, fixed_abs, tag = 'smem constant byte address 0x4 - core index']
  #allocation1 [shape = 'u32[144,128]{1,0:T(1,128)}', space=vmem, size = 0x12000, scoped, tag = 'internal scratch']
  %s0 = inlined_call_operand.hbm [shape: f32[8,8,128], index: 0, kind: input, shape index: {}]
  %s1 = inlined_call_operand.hbm [shape: f32[8,8], index: 1, kind: input, shape index: {}]
  %s2 = inlined_call_operand.hbm [shape: f32[128,128], index: 2, kind: input, shape index: {}]
  %s3 = inlined_call_operand.hbm [shape: f32[128,128], index: 3, kind: input, shape index: {}]
  %s4 = inlined_call_operand.hbm [shape: f32[128,128], index: 4, kind: input, shape index: {}]
  %s5 = inlined_call_operand.vmem [shape: f32[1,128], index: 5, kind: input, shape index: {}]
  %s6 = inlined_call_operand.hbm [shape: f32[8,128], index: 6, kind: output, shape index: {}]
  %s7 = sld [smem:[#allocation0]]
  $region54: #{tpu_custom_call.1} parent=0
    _
  %s9 = ssub.s32 1, %s7
  %s10 = scalar_select 0, %s9, %s7
  $region1: #{tpu_custom_call.1} parent=0
    #allocation2 [shape = 'u8[32768]{0}', space=vmem, size = 0x8000, scoped, tag = 'input window, operand 0, single buffered']
    #allocation3 [shape = 's32[1]{0}', space=sflag, size = 0x4, scoped, tag = 'scoped memory for tpu_custom_call.1']
    #allocation4 [shape = 's32[1]{0}', space=sflag, size = 0x4, scoped, tag = 'scoped memory for tpu_custom_call.1']
    #allocation5 [shape = 'u8[4096]{0}', space=vmem, size = 0x1000, scoped, tag = 'input window, operand 1, single buffered']
    #allocation6 [shape = 's32[1]{0}', space=sflag, size = 0x4, scoped, tag = 'scoped memory for tpu_custom_call.1']
    #allocation7 [shape = 'u8[65536]{0}', space=vmem, size = 0x10000, scoped, tag = 'input window, operand 2, single buffered']
    #allocation8 [shape = 'u8[65536]{0}', space=vmem, size = 0x10000, scoped, tag = 'input window, operand 3, single buffered']
    #allocation9 [shape = 's32[1]{0}', space=sflag, size = 0x4, scoped, tag = 'scoped memory for tpu_custom_call.1']
    #allocation10 [shape = 'u8[65536]{0}', space=vmem, size = 0x10000, scoped, tag = 'input window, operand 4, single buffered']
    #allocation11 [shape = 'u8[4096]{0}', space=vmem, size = 0x1000, scoped, tag = 'output window, operand 0, single buffered']
    %11 = vsyncpa [#allocation3], 0
    %12 = vsyncpa [#allocation6], 0
    %13 = vsyncpa [#allocation9], 0
    %14 = vsyncpa [#allocation4], 0
    // Predicated region
    $region2: #{tpu_custom_call.1} parent=1 // pred_check
      _
    $region3: #{tpu_custom_call.1} parent=1 // pred_check_branch
      %16 = sbr.rel (0) target = $region5
    $region4: #{tpu_custom_call.1} parent=1 // pred_region
      %s18 = ssub.s32 1024, 1024
      %19 = vsyncadd [#allocation3], %s18
      %s20 = sshll.u32 [#allocation2], 4
      %s21 = int_to_ptr.vmem [resolvable:$true] %s20
      %26 = dma.hbm_to_vmem [thread:$0]  %s0, 1024, %s21, [#allocation3], 128, 128, 8
    $region5: #{tpu_custom_call.1} parent=1 // pred_fallthru
      _
    // Predicated region
    $region6: #{tpu_custom_call.1} parent=1 // pred_check
      _
    $region7: #{tpu_custom_call.1} parent=1 // pred_check_branch
      %28 = sbr.rel (0) target = $region9
    $region8: #{tpu_custom_call.1} parent=1 // pred_region
      %s30 = ssub.s32 128, 128
      %31 = vsyncadd [#allocation6], %s30
      %s33 = sshll.u32 [#allocation5], 4
      %s34 = int_to_ptr.vmem [resolvable:$true] %s33
      %36 = dma.hbm_to_vmem [thread:$0]  %s1, 128, %s34, [#allocation6]
    $region9: #{tpu_custom_call.1} parent=1 // pred_fallthru
      _
    // Predicated region
    $region10: #{tpu_custom_call.1} parent=1 // pred_check
      _
    $region11: #{tpu_custom_call.1} parent=1 // pred_check_branch
      %38 = sbr.rel (0) target = $region13
    $region12: #{tpu_custom_call.1} parent=1 // pred_region
      %s40 = ssub.s32 2048, 2048
      %41 = vsyncadd [#allocation6], %s40
      %s42 = sshll.u32 [#allocation7], 4
      %s43 = int_to_ptr.vmem [resolvable:$true] %s42
      %48 = dma.hbm_to_vmem [thread:$0]  %s2, 2048, %s43, [#allocation6], 128, 128, 8
    $region13: #{tpu_custom_call.1} parent=1 // pred_fallthru
      _
    // Predicated region
    $region14: #{tpu_custom_call.1} parent=1 // pred_check
      _
    $region15: #{tpu_custom_call.1} parent=1 // pred_check_branch
      %50 = sbr.rel (0) target = $region17
    $region16: #{tpu_custom_call.1} parent=1 // pred_region
      %s52 = ssub.s32 2048, 2048
      %53 = vsyncadd [#allocation9], %s52
      %s54 = sshll.u32 [#allocation8], 4
      %s55 = int_to_ptr.vmem [resolvable:$true] %s54
      %60 = dma.hbm_to_vmem [thread:$0]  %s3, 2048, %s55, [#allocation9], 128, 128, 8
    $region17: #{tpu_custom_call.1} parent=1 // pred_fallthru
      _
    // Predicated region
    $region18: #{tpu_custom_call.1} parent=1 // pred_check
      _
    $region19: #{tpu_custom_call.1} parent=1 // pred_check_branch
      %62 = sbr.rel (0) target = $region21
    $region20: #{tpu_custom_call.1} parent=1 // pred_region
      %s64 = ssub.s32 2048, 2048
      %65 = vsyncadd [#allocation9], %s64
      %s66 = sshll.u32 [#allocation10], 4
      %s67 = int_to_ptr.vmem [resolvable:$true] %s66
      %72 = dma.hbm_to_vmem [thread:$0]  %s4, 2048, %s67, [#allocation9], 128, 128, 8
    $region21: #{tpu_custom_call.1} parent=1 // pred_fallthru
      _
    // Predicated region
    $region22: #{tpu_custom_call.1} parent=1 // pred_check
      _
    $region23: #{tpu_custom_call.1} parent=1 // pred_check_branch
      %74 = sbr.rel (0) target = $region25
    $region24: #{tpu_custom_call.1} parent=1 // pred_region
      _
    $region25: #{tpu_custom_call.1} parent=1 // pred_fallthru
      _
    // Predicated region
    $region26: #{tpu_custom_call.1} parent=1 // pred_check
      _
    $region27: #{tpu_custom_call.1} parent=1 // pred_check_branch
      %76 = sbr.rel (0) target = $region29
    $region28: #{tpu_custom_call.1} parent=1 // pred_region
      %77 = dma.done [#allocation3], 1024
    $region29: #{tpu_custom_call.1} parent=1 // pred_fallthru
      _
    // Predicated region
    $region30: #{tpu_custom_call.1} parent=1 // pred_check
      _
    $region31: #{tpu_custom_call.1} parent=1 // pred_check_branch
      %79 = sbr.rel (0) target = $region33
    $region32: #{tpu_custom_call.1} parent=1 // pred_region
      %80 = dma.done [#allocation6], 128
    $region33: #{tpu_custom_call.1} parent=1 // pred_fallthru
      _
    // Predicated region
    $region34: #{tpu_custom_call.1} parent=1 // pred_check
      _
    $region35: #{tpu_custom_call.1} parent=1 // pred_check_branch
      %82 = sbr.rel (0) target = $region37
    $region36: #{tpu_custom_call.1} parent=1 // pred_region
      %83 = dma.done [#allocation6], 2048
    $region37: #{tpu_custom_call.1} parent=1 // pred_fallthru
      _
    // Predicated region
    $region38: #{tpu_custom_call.1} parent=1 // pred_check
      _
    $region39: #{tpu_custom_call.1} parent=1 // pred_check_branch
      %85 = sbr.rel (0) target = $region41
    $region40: #{tpu_custom_call.1} parent=1 // pred_region
      %86 = dma.done [#allocation9], 2048
    $region41: #{tpu_custom_call.1} parent=1 // pred_fallthru
      _
    // Predicated region
    $region42: #{tpu_custom_call.1} parent=1 // pred_check
      _
    $region43: #{tpu_custom_call.1} parent=1 // pred_check_branch
      %88 = sbr.rel (0) target = $region45
    $region44: #{tpu_custom_call.1} parent=1 // pred_region
      %89 = dma.done [#allocation9], 2048
    $region45: #{tpu_custom_call.1} parent=1 // pred_fallthru
      _
    %v90 = vld [vmem:[#allocation2] sm:$0xff]
    %v91 = vld [vmem:[#allocation2 + $0x8] sm:$0xff]
    %v92 = vld [vmem:[#allocation2 + $0x10] sm:$0xff]
    %v93 = vld [vmem:[#allocation2 + $0x18] sm:$0xff]
    %v94 = vld [vmem:[#allocation2 + $0x20] sm:$0xff]
    %v95 = vld [vmem:[#allocation2 + $0x28] sm:$0xff]
    %v96 = vld [vmem:[#allocation2 + $0x30] sm:$0xff]
    %v97 = vld [vmem:[#allocation2 + $0x38] sm:$0xff]
    %v98 = vld [vmem:[#allocation5] sm:$0xff]
    %v99 = vlaneseq
    %v100 = vshrl.u32 %v99, 7
    %v101 = vsub.s32 0, %v100
    %v102 = vrot.slane %v98, %v101
    %104 = vbcast.lane.b32.xlu0 %v102, 256
    %v105 = vpop.permute.xlu0 %104
    %v106 = vlaneseq
    %v107 = vshrl.u32 %v106, 7
    %v108 = vsub.s32 1, %v107
    %v109 = vrot.slane %v98, %v108
    %111 = vbcast.lane.b32.xlu0 %v109, 256
    %v112 = vpop.permute.xlu0 %111
    %v113 = vlaneseq
    %v114 = vshrl.u32 %v113, 7
    %v115 = vsub.s32 2, %v114
    %v116 = vrot.slane %v98, %v115
    %118 = vbcast.lane.b32.xlu0 %v116, 256
    %v119 = vpop.permute.xlu0 %118
    %v120 = vlaneseq
    %v121 = vshrl.u32 %v120, 7
    %v122 = vsub.s32 3, %v121
    %v123 = vrot.slane %v98, %v122
    %125 = vbcast.lane.b32.xlu0 %v123, 256
    %v126 = vpop.permute.xlu0 %125
    %v127 = vlaneseq
    %v128 = vshrl.u32 %v127, 7
    %v129 = vsub.s32 4, %v128
    %v130 = vrot.slane %v98, %v129
    %132 = vbcast.lane.b32.xlu0 %v130, 256
    %v133 = vpop.permute.xlu0 %132
    %v134 = vlaneseq
    %v135 = vshrl.u32 %v134, 7
    %v136 = vsub.s32 5, %v135
    %v137 = vrot.slane %v98, %v136
    %139 = vbcast.lane.b32.xlu0 %v137, 256
    %v140 = vpop.permute.xlu0 %139
    %v141 = vlaneseq
    %v142 = vshrl.u32 %v141, 7
    %v143 = vsub.s32 6, %v142
    %v144 = vrot.slane %v98, %v143
    %146 = vbcast.lane.b32.xlu0 %v144, 256
    %v147 = vpop.permute.xlu0 %146
    %v148 = vlaneseq
    %v149 = vshrl.u32 %v148, 7
    %v150 = vsub.s32 7, %v149
    %v151 = vrot.slane %v98, %v150
    %153 = vbcast.lane.b32.xlu0 %v151, 256
    %v154 = vpop.permute.xlu0 %153
    %v155 = vsub.f32 1.0, %v105
    %v156 = vsub.f32 1.0, %v112
    %v157 = vsub.f32 1.0, %v119
    %v158 = vsub.f32 1.0, %v126
    %v159 = vsub.f32 1.0, %v133
    %v160 = vsub.f32 1.0, %v140
    %v161 = vsub.f32 1.0, %v147
    %v162 = vsub.f32 1.0, %v154
    %v163 = vmul.f32 %v155, -10000.0
    %v164 = vmul.f32 %v156, -10000.0
    %v165 = vmul.f32 %v157, -10000.0
    %v166 = vmul.f32 %v158, -10000.0
    %v167 = vmul.f32 %v159, -10000.0
    %v168 = vmul.f32 %v160, -10000.0
    %v169 = vmul.f32 %v161, -10000.0
    %v170 = vmul.f32 %v162, -10000.0
    %v171 = vadd.f32 %v90, %v163
    %v172 = vadd.f32 %v91, %v164
    %v173 = vadd.f32 %v92, %v165
    %v174 = vadd.f32 %v93, %v166
    %v175 = vadd.f32 %v94, %v167
    %v176 = vadd.f32 %v95, %v168
    %v177 = vadd.f32 %v96, %v169
    %v178 = vadd.f32 %v97, %v170
    %v179 = vrot.slane %v171, 4
    %v180 = vmax.f32 %v171, %v179
    %v181 = vrot.slane %v180, 2
    %v182 = vmax.f32 %v180, %v181
    %v183 = vrot.slane %v182, 1
    %v184 = vmax.f32 %v182, %v183
    %v185 = vrot.slane %v172, 4
    %v186 = vmax.f32 %v172, %v185
    %v187 = vrot.slane %v186, 2
    %v188 = vmax.f32 %v186, %v187
    %v189 = vrot.slane %v188, 1
    %v190 = vmax.f32 %v188, %v189
    %v191 = vrot.slane %v173, 4
    %v192 = vmax.f32 %v173, %v191
    %v193 = vrot.slane %v192, 2
    %v194 = vmax.f32 %v192, %v193
    %v195 = vrot.slane %v194, 1
    %v196 = vmax.f32 %v194, %v195
    %v197 = vrot.slane %v174, 4
    %v198 = vmax.f32 %v174, %v197
    %v199 = vrot.slane %v198, 2
    %v200 = vmax.f32 %v198, %v199
    %v201 = vrot.slane %v200, 1
    %v202 = vmax.f32 %v200, %v201
    %v203 = vrot.slane %v175, 4
    %v204 = vmax.f32 %v175, %v203
    %v205 = vrot.slane %v204, 2
    %v206 = vmax.f32 %v204, %v205
    %v207 = vrot.slane %v206, 1
    %v208 = vmax.f32 %v206, %v207
    %v209 = vrot.slane %v176, 4
    %v210 = vmax.f32 %v176, %v209
    %v211 = vrot.slane %v210, 2
    %v212 = vmax.f32 %v210, %v211
    %v213 = vrot.slane %v212, 1
    %v214 = vmax.f32 %v212, %v213
    %v215 = vrot.slane %v177, 4
    %v216 = vmax.f32 %v177, %v215
    %v217 = vrot.slane %v216, 2
    %v218 = vmax.f32 %v216, %v217
    %v219 = vrot.slane %v218, 1
    %v220 = vmax.f32 %v218, %v219
    %v221 = vrot.slane %v178, 4
    %v222 = vmax.f32 %v178, %v221
    %v223 = vrot.slane %v222, 2
    %v224 = vmax.f32 %v222, %v223
    %v225 = vrot.slane %v224, 1
    %v226 = vmax.f32 %v224, %v225
    %vm227 = vcmask 64512
    %v228 = vsel %vm227, %v98, 0.0
    %229 = vadd.xlane.f32.xlu0 %v228
    %v230 = vpop.xlane.xlu0 %229
    %v231 = vrcp.pop %v230
    %v232 = vmul.f32 %v90, %v105
    %v233 = vmul.f32 %v91, %v112
    %v234 = vmul.f32 %v92, %v119
    %v235 = vmul.f32 %v93, %v126
    %v236 = vmul.f32 %v94, %v133
    %v237 = vmul.f32 %v95, %v140
    %v238 = vmul.f32 %v96, %v147
    %v239 = vmul.f32 %v97, %v154
    %v240 = vrot.slane %v232, 4
    %v241 = vadd.f32 %v232, %v240
    %v242 = vrot.slane %v241, 2
    %v243 = vadd.f32 %v241, %v242
    %v244 = vrot.slane %v243, 1
    %v245 = vadd.f32 %v243, %v244
    %v246 = vrot.slane %v233, 4
    %v247 = vadd.f32 %v233, %v246
    %v248 = vrot.slane %v247, 2
    %v249 = vadd.f32 %v247, %v248
    %v250 = vrot.slane %v249, 1
    %v251 = vadd.f32 %v249, %v250
    %v252 = vrot.slane %v234, 4
    %v253 = vadd.f32 %v234, %v252
    %v254 = vrot.slane %v253, 2
    %v255 = vadd.f32 %v253, %v254
    %v256 = vrot.slane %v255, 1
    %v257 = vadd.f32 %v255, %v256
    %v258 = vrot.slane %v235, 4
    %v259 = vadd.f32 %v235, %v258
    %v260 = vrot.slane %v259, 2
    %v261 = vadd.f32 %v259, %v260
    %v262 = vrot.slane %v261, 1
    %v263 = vadd.f32 %v261, %v262
    %v264 = vrot.slane %v236, 4
    %v265 = vadd.f32 %v236, %v264
    %v266 = vrot.slane %v265, 2
    %v267 = vadd.f32 %v265, %v266
    %v268 = vrot.slane %v267, 1
    %v269 = vadd.f32 %v267, %v268
    %v270 = vrot.slane %v237, 4
    %v271 = vadd.f32 %v237, %v270
    %v272 = vrot.slane %v271, 2
    %v273 = vadd.f32 %v271, %v272
    %v274 = vrot.slane %v273, 1
    %v275 = vadd.f32 %v273, %v274
    %v276 = vrot.slane %v238, 4
    %v277 = vadd.f32 %v238, %v276
    %v278 = vrot.slane %v277, 2
    %v279 = vadd.f32 %v277, %v278
    %v280 = vrot.slane %v279, 1
    %v281 = vadd.f32 %v279, %v280
    %v282 = vrot.slane %v239, 4
    %v283 = vadd.f32 %v239, %v282
    %v284 = vrot.slane %v283, 2
    %v285 = vadd.f32 %v283, %v284
    %v286 = vrot.slane %v285, 1
    %v287 = vadd.f32 %v285, %v286
    %v289 = vrot.slane %v231, 1
    %v290 = vrot.slane %v231, 2
    %v291 = vrot.slane %v231, 3
    %v292 = vrot.slane %v231, 4
    %v293 = vrot.slane %v231, 5
    %v294 = vrot.slane %v231, 6
    %v295 = vrot.slane %v231, 7
    %v304 = vmul.f32 %v245, %v231
    %v305 = vmul.f32 %v251, %v289
    %v306 = vmul.f32 %v257, %v290
    %v307 = vmul.f32 %v263, %v291
    %v308 = vmul.f32 %v269, %v292
    %v309 = vmul.f32 %v275, %v293
    %v310 = vmul.f32 %v281, %v294
    %v311 = vmul.f32 %v287, %v295
    %v312 = vld [vmem:[#allocation7] sm:$0xff]
    %v313 = vld [vmem:[#allocation7 + $0x8] sm:$0xff]
    %v314 = vld [vmem:[#allocation7 + $0x10] sm:$0xff]
    %v315 = vld [vmem:[#allocation7 + $0x18] sm:$0xff]
    %v316 = vld [vmem:[#allocation7 + $0x20] sm:$0xff]
    %v317 = vld [vmem:[#allocation7 + $0x28] sm:$0xff]
    %v318 = vld [vmem:[#allocation7 + $0x30] sm:$0xff]
    %v319 = vld [vmem:[#allocation7 + $0x38] sm:$0xff]
    %v320 = vld [vmem:[#allocation7 + $0x40] sm:$0xff]
    %v321 = vld [vmem:[#allocation7 + $0x48] sm:$0xff]
    %v322 = vld [vmem:[#allocation7 + $0x50] sm:$0xff]
    %v323 = vld [vmem:[#allocation7 + $0x58] sm:$0xff]
    %v324 = vld [vmem:[#allocation7 + $0x60] sm:$0xff]
    %v325 = vld [vmem:[#allocation7 + $0x68] sm:$0xff]
    %v326 = vld [vmem:[#allocation7 + $0x70] sm:$0xff]
    %v327 = vld [vmem:[#allocation7 + $0x78] sm:$0xff]
    %v328 = vld [vmem:[#allocation8] sm:$0xff]
    %v329 = vld [vmem:[#allocation8 + $0x8] sm:$0xff]
    %v330 = vld [vmem:[#allocation8 + $0x10] sm:$0xff]
    %v331 = vld [vmem:[#allocation8 + $0x18] sm:$0xff]
    %v332 = vld [vmem:[#allocation8 + $0x20] sm:$0xff]
    %v333 = vld [vmem:[#allocation8 + $0x28] sm:$0xff]
    %v334 = vld [vmem:[#allocation8 + $0x30] sm:$0xff]
    %v335 = vld [vmem:[#allocation8 + $0x38] sm:$0xff]
    %v336 = vld [vmem:[#allocation8 + $0x40] sm:$0xff]
    %v337 = vld [vmem:[#allocation8 + $0x48] sm:$0xff]
    %v338 = vld [vmem:[#allocation8 + $0x50] sm:$0xff]
    %v339 = vld [vmem:[#allocation8 + $0x58] sm:$0xff]
    %v340 = vld [vmem:[#allocation8 + $0x60] sm:$0xff]
    %v341 = vld [vmem:[#allocation8 + $0x68] sm:$0xff]
    %v342 = vld [vmem:[#allocation8 + $0x70] sm:$0xff]
    %v343 = vld [vmem:[#allocation8 + $0x78] sm:$0xff]
    %vm352 = vcmask 1041409
    %v353 = vsel %vm352, %v190, %v184
    %vm354 = vcmask 1042434
    %v355 = vsel %vm354, %v196, %v353
    %vm356 = vcmask 1043459
    %v357 = vsel %vm356, %v202, %v355
    %vm358 = vcmask 1044484
    %v359 = vsel %vm358, %v208, %v357
    %vm360 = vcmask 1045509
    %v361 = vsel %vm360, %v214, %v359
    %vm362 = vcmask 1046534
    %v363 = vsel %vm362, %v220, %v361
    %vm364 = vcmask 1047559
    %v365 = vsel %vm364, %v226, %v363
    %367 = vmatprep.subr.mxu0 0.0
    %368 = vmatpush1.msra.mxu0 %v328
    %369 = vmatprep.subr.mxu0 0.0
    %370 = vmatpush1.msra.mxu0 %v329
    %371 = vmatprep.subr.mxu0 0.0
    %372 = vmatpush1.msra.mxu0 %v330
    %373 = vmatprep.subr.mxu0 0.0
    %374 = vmatpush1.msra.mxu0 %v331
    %375 = vmatprep.subr.mxu0 0.0
    %376 = vmatpush1.msra.mxu0 %v332
    %377 = vmatprep.subr.mxu0 0.0
    %378 = vmatpush1.msra.mxu0 %v333
    %379 = vmatprep.subr.mxu0 0.0
    %380 = vmatpush1.msra.mxu0 %v334
    %381 = vmatprep.subr.mxu0 0.0
    %382 = vmatpush1.msra.mxu0 %v335
    %383 = vmatprep.subr.mxu0 0.0
    %384 = vmatpush1.msra.mxu0 %v336
    %385 = vmatprep.subr.mxu0 0.0
    %386 = vmatpush1.msra.mxu0 %v337
    %387 = vmatprep.subr.mxu0 0.0
    %388 = vmatpush1.msra.mxu0 %v338
    %389 = vmatprep.subr.mxu0 0.0
    %390 = vmatpush1.msra.mxu0 %v339
    %391 = vmatprep.subr.mxu0 0.0
    %392 = vmatpush1.msra.mxu0 %v340
    %393 = vmatprep.subr.mxu0 0.0
    %394 = vmatpush1.msra.mxu0 %v341
    %395 = vmatprep.subr.mxu0 0.0
    %396 = vmatpush1.msra.mxu0 %v342
    %397 = vmatprep.subr.mxu0 0.0
    %398 = vmatpush1.msra.mxu0 %v343
    %399 = vmatprep.subr.mxu0 0.0
    %400 = vmatpush1.msra.mxu0 0.0
    %401 = vmatprep.subr.mxu0 0.0
    %402 = vmatpush1.msra.mxu0 0.0
    %403 = vmatprep.subr.mxu0 0.0
    %404 = vmatpush1.msra.mxu0 0.0
    %405 = vmatprep.subr.mxu0 0.0
    %406 = vmatpush1.msra.mxu0 0.0
    %407 = vmatprep.subr.mxu0 0.0
    %408 = vmatpush1.msra.mxu0 0.0
    %409 = vmatprep.subr.mxu0 0.0
    %410 = vmatpush1.msra.mxu0 0.0
    %411 = vmatprep.subr.mxu0 0.0
    %412 = vmatpush1.msra.mxu0 0.0
    %413 = vmatprep.subr.mxu0 0.0
    %414 = vmatpush1.msra.mxu0 0.0
    %415 = vmatprep.subr.mxu0 0.0
    %416 = vmatpush1.msra.mxu0 0.0
    %417 = vmatprep.subr.mxu0 0.0
    %418 = vmatpush1.msra.mxu0 0.0
    %419 = vmatprep.subr.mxu0 0.0
    %420 = vmatpush1.msra.mxu0 0.0
    %421 = vmatprep.subr.mxu0 0.0
    %422 = vmatpush1.msra.mxu0 0.0
    %423 = vmatprep.subr.mxu0 0.0
    %424 = vmatpush1.msra.mxu0 0.0
    %425 = vmatprep.subr.mxu0 0.0
    %426 = vmatpush1.msra.mxu0 0.0
    %427 = vmatprep.subr.mxu0 0.0
    %428 = vmatpush1.msra.mxu0 0.0
    %429 = vmatprep.subr.mxu0 0.0
    %430 = vmatpush1.msra.mxu0 0.0
    %431 = vmatprep.mubr.f32.mxu0 0.0
    %432 = vmatmul.mubr.f32.gmra.mrb[0].mxu0 %v365
    %v433 = vpop.f32.mrb[0].mxu0
    %v434 = vadd.f32 0.0, %v433
    %v435 = vpop.f32.mrb[0].mxu0
    %436 = vdwg.mxu0
    %v445 = vrot.slane %v91, 7
    %v446 = vsel %vm352, %v445, %v90
    %v447 = vrot.slane %v92, 6
    %v448 = vsel %vm354, %v447, %v446
    %v449 = vrot.slane %v93, 5
    %v450 = vsel %vm356, %v449, %v448
    %v451 = vrot.slane %v94, 4
    %v452 = vsel %vm358, %v451, %v450
    %v453 = vrot.slane %v95, 3
    %v454 = vsel %vm360, %v453, %v452
    %v455 = vrot.slane %v96, 2
    %v456 = vsel %vm362, %v455, %v454
    %v457 = vrot.slane %v97, 1
    %v458 = vsel %vm364, %v457, %v456
    %460 = vmatprep.subr.mxu0 0.0
    %461 = vmatpush1.msra.mxu0 %v312
    %462 = vmatprep.subr.mxu0 0.0
    %463 = vmatpush1.msra.mxu0 %v313
    %464 = vmatprep.subr.mxu0 0.0
    %465 = vmatpush1.msra.mxu0 %v314
    %466 = vmatprep.subr.mxu0 0.0
    %467 = vmatpush1.msra.mxu0 %v315
    %468 = vmatprep.subr.mxu0 0.0
    %469 = vmatpush1.msra.mxu0 %v316
    %470 = vmatprep.subr.mxu0 0.0
    %471 = vmatpush1.msra.mxu0 %v317
    %472 = vmatprep.subr.mxu0 0.0
    %473 = vmatpush1.msra.mxu0 %v318
    %474 = vmatprep.subr.mxu0 0.0
    %475 = vmatpush1.msra.mxu0 %v319
    %476 = vmatprep.subr.mxu0 0.0
    %477 = vmatpush1.msra.mxu0 %v320
    %478 = vmatprep.subr.mxu0 0.0
    %479 = vmatpush1.msra.mxu0 %v321
    %480 = vmatprep.subr.mxu0 0.0
    %481 = vmatpush1.msra.mxu0 %v322
    %482 = vmatprep.subr.mxu0 0.0
    %483 = vmatpush1.msra.mxu0 %v323
    %484 = vmatprep.subr.mxu0 0.0
    %485 = vmatpush1.msra.mxu0 %v324
    %486 = vmatprep.subr.mxu0 0.0
    %487 = vmatpush1.msra.mxu0 %v325
    %488 = vmatprep.subr.mxu0 0.0
    %489 = vmatpush1.msra.mxu0 %v326
    %490 = vmatprep.subr.mxu0 0.0
    %491 = vmatpush1.msra.mxu0 %v327
    %492 = vmatprep.subr.mxu0 0.0
    %493 = vmatpush1.msra.mxu0 0.0
    %494 = vmatprep.subr.mxu0 0.0
    %495 = vmatpush1.msra.mxu0 0.0
    %496 = vmatprep.subr.mxu0 0.0
    %497 = vmatpush1.msra.mxu0 0.0
    %498 = vmatprep.subr.mxu0 0.0
    %499 = vmatpush1.msra.mxu0 0.0
    %500 = vmatprep.subr.mxu0 0.0
    %501 = vmatpush1.msra.mxu0 0.0
    %502 = vmatprep.subr.mxu0 0.0
    %503 = vmatpush1.msra.mxu0 0.0
    %504 = vmatprep.subr.mxu0 0.0
    %505 = vmatpush1.msra.mxu0 0.0
    %506 = vmatprep.subr.mxu0 0.0
    %507 = vmatpush1.msra.mxu0 0.0
    %508 = vmatprep.subr.mxu0 0.0
    %509 = vmatpush1.msra.mxu0 0.0
    %510 = vmatprep.subr.mxu0 0.0
    %511 = vmatpush1.msra.mxu0 0.0
    %512 = vmatprep.subr.mxu0 0.0
    %513 = vmatpush1.msra.mxu0 0.0
    %514 = vmatprep.subr.mxu0 0.0
    %515 = vmatpush1.msra.mxu0 0.0
    %516 = vmatprep.subr.mxu0 0.0
    %517 = vmatpush1.msra.mxu0 0.0
    %518 = vmatprep.subr.mxu0 0.0
    %519 = vmatpush1.msra.mxu0 0.0
    %520 = vmatprep.subr.mxu0 0.0
    %521 = vmatpush1.msra.mxu0 0.0
    %522 = vmatprep.subr.mxu0 0.0
    %523 = vmatpush1.msra.mxu0 0.0
    %524 = vmatprep.mubr.f32.mxu0 0.0
    %525 = vmatmul.mubr.f32.gmra.mrb[0].mxu0 %v458
    %v526 = vpop.f32.mrb[0].mxu0
    %v527 = vadd.f32 %v434, %v526
    %v528 = vpop.f32.mrb[0].mxu0
    %529 = vdwg.mxu0
    %v530 = vld [vmem:[#allocation10] sm:$0xff]
    %v531 = vld [vmem:[#allocation10 + $0x8] sm:$0xff]
    %v532 = vld [vmem:[#allocation10 + $0x10] sm:$0xff]
    %v533 = vld [vmem:[#allocation10 + $0x18] sm:$0xff]
    %v534 = vld [vmem:[#allocation10 + $0x20] sm:$0xff]
    %v535 = vld [vmem:[#allocation10 + $0x28] sm:$0xff]
    %v536 = vld [vmem:[#allocation10 + $0x30] sm:$0xff]
    %v537 = vld [vmem:[#allocation10 + $0x38] sm:$0xff]
    %v538 = vld [vmem:[#allocation10 + $0x40] sm:$0xff]
    %v539 = vld [vmem:[#allocation10 + $0x48] sm:$0xff]
    %v540 = vld [vmem:[#allocation10 + $0x50] sm:$0xff]
    %v541 = vld [vmem:[#allocation10 + $0x58] sm:$0xff]
    %v542 = vld [vmem:[#allocation10 + $0x60] sm:$0xff]
    %v543 = vld [vmem:[#allocation10 + $0x68] sm:$0xff]
    %v544 = vld [vmem:[#allocation10 + $0x70] sm:$0xff]
    %v545 = vld [vmem:[#allocation10 + $0x78] sm:$0xff]
    %v554 = vrot.slane %v305, 7
    %v555 = vsel %vm352, %v554, %v304
    %v556 = vrot.slane %v306, 6
    %v557 = vsel %vm354, %v556, %v555
    %v558 = vrot.slane %v307, 5
    %v559 = vsel %vm356, %v558, %v557
    %v560 = vrot.slane %v308, 4
    %v561 = vsel %vm358, %v560, %v559
    %v562 = vrot.slane %v309, 3
    %v563 = vsel %vm360, %v562, %v561
    %v564 = vrot.slane %v310, 2
    %v565 = vsel %vm362, %v564, %v563
    %v566 = vrot.slane %v311, 1
    %v567 = vsel %vm364, %v566, %v565
    %569 = vmatprep.subr.mxu0 0.0
    %570 = vmatpush1.msra.mxu0 %v530
    %571 = vmatprep.subr.mxu0 0.0
    %572 = vmatpush1.msra.mxu0 %v531
    %573 = vmatprep.subr.mxu0 0.0
    %574 = vmatpush1.msra.mxu0 %v532
    %575 = vmatprep.subr.mxu0 0.0
    %576 = vmatpush1.msra.mxu0 %v533
    %577 = vmatprep.subr.mxu0 0.0
    %578 = vmatpush1.msra.mxu0 %v534
    %579 = vmatprep.subr.mxu0 0.0
    %580 = vmatpush1.msra.mxu0 %v535
    %581 = vmatprep.subr.mxu0 0.0
    %582 = vmatpush1.msra.mxu0 %v536
    %583 = vmatprep.subr.mxu0 0.0
    %584 = vmatpush1.msra.mxu0 %v537
    %585 = vmatprep.subr.mxu0 0.0
    %586 = vmatpush1.msra.mxu0 %v538
    %587 = vmatprep.subr.mxu0 0.0
    %588 = vmatpush1.msra.mxu0 %v539
    %589 = vmatprep.subr.mxu0 0.0
    %590 = vmatpush1.msra.mxu0 %v540
    %591 = vmatprep.subr.mxu0 0.0
    %592 = vmatpush1.msra.mxu0 %v541
    %593 = vmatprep.subr.mxu0 0.0
    %594 = vmatpush1.msra.mxu0 %v542
    %595 = vmatprep.subr.mxu0 0.0
    %596 = vmatpush1.msra.mxu0 %v543
    %597 = vmatprep.subr.mxu0 0.0
    %598 = vmatpush1.msra.mxu0 %v544
    %599 = vmatprep.subr.mxu0 0.0
    %600 = vmatpush1.msra.mxu0 %v545
    %601 = vmatprep.subr.mxu0 0.0
    %602 = vmatpush1.msra.mxu0 0.0
    %603 = vmatprep.subr.mxu0 0.0
    %604 = vmatpush1.msra.mxu0 0.0
    %605 = vmatprep.subr.mxu0 0.0
    %606 = vmatpush1.msra.mxu0 0.0
    %607 = vmatprep.subr.mxu0 0.0
    %608 = vmatpush1.msra.mxu0 0.0
    %609 = vmatprep.subr.mxu0 0.0
    %610 = vmatpush1.msra.mxu0 0.0
    %611 = vmatprep.subr.mxu0 0.0
    %612 = vmatpush1.msra.mxu0 0.0
    %613 = vmatprep.subr.mxu0 0.0
    %614 = vmatpush1.msra.mxu0 0.0
    %615 = vmatprep.subr.mxu0 0.0
    %616 = vmatpush1.msra.mxu0 0.0
    %617 = vmatprep.subr.mxu0 0.0
    %618 = vmatpush1.msra.mxu0 0.0
    %619 = vmatprep.subr.mxu0 0.0
    %620 = vmatpush1.msra.mxu0 0.0
    %621 = vmatprep.subr.mxu0 0.0
    %622 = vmatpush1.msra.mxu0 0.0
    %623 = vmatprep.subr.mxu0 0.0
    %624 = vmatpush1.msra.mxu0 0.0
    %625 = vmatprep.subr.mxu0 0.0
    %626 = vmatpush1.msra.mxu0 0.0
    %627 = vmatprep.subr.mxu0 0.0
    %628 = vmatpush1.msra.mxu0 0.0
    %629 = vmatprep.subr.mxu0 0.0
    %630 = vmatpush1.msra.mxu0 0.0
    %631 = vmatprep.subr.mxu0 0.0
    %632 = vmatpush1.msra.mxu0 0.0
    %633 = vmatprep.mubr.f32.mxu0 0.0
    %634 = vmatmul.mubr.f32.gmra.mrb[0].mxu0 %v567
    %v635 = vpop.f32.mrb[0].mxu0
    %v636 = vadd.f32 0.0, %v635
    %v637 = vpop.f32.mrb[0].mxu0
    %638 = vdwg.mxu0
    %v639 = vadd.f32 %v527, %v636
    %v640 = vld [vmem:[%s5] sm:$0x1]
    %v642 = vlaneseq
    %v643 = vshrl.u32 %v642, 7
    %v644 = vsub.s32 0, %v643
    %v645 = vrot.slane %v640, %v644
    %v647 = vadd.f32 %v639, %v645
    %v648 = vtanh.pop %v647
    %649 = vst [vmem:[#allocation11] sm:$0xff] %v648
    // Predicated region
    $region46: #{tpu_custom_call.1} parent=1 // pred_check
      _
    $region47: #{tpu_custom_call.1} parent=1 // pred_check_branch
      %651 = sbr.rel (0) target = $region49
    $region48: #{tpu_custom_call.1} parent=1 // pred_region
      %s653 = ssub.s32 128, 128
      %654 = vsyncadd [#allocation4], %s653
      %s656 = sshll.u32 [#allocation11], 4
      %s657 = int_to_ptr.vmem [resolvable:$true] %s656
      %659 = dma.vmem_to_hbm [thread:$0]  %s657, 128, %s6, [#allocation4]
    $region49: #{tpu_custom_call.1} parent=1 // pred_fallthru
      _
    // Predicated region
    $region50: #{tpu_custom_call.1} parent=1 // pred_check
      _
    $region51: #{tpu_custom_call.1} parent=1 // pred_check_branch
      %661 = sbr.rel (0) target = $region53
    $region52: #{tpu_custom_call.1} parent=1 // pred_region
      %662 = dma.done [#allocation4], 128
    $region53: #{tpu_custom_call.1} parent=1 // pred_fallthru
      _
    %663 = vsyncpa [#allocation3], 1
    %664 = vsyncpa [#allocation6], 1
    %665 = vsyncpa [#allocation9], 1
    %666 = vsyncpa [#allocation4], 1

</llo_original>
